<compile_context>
chip_gen: v6e
topology: v6e:2x2x1
jax: 0.10.0
libtpu: 0.0.40
codegen_flags: <defaults>
</compile_context>

<pallas_src>
import math

import jax
import jax.numpy as jnp
from jax.experimental import pallas as pl
from jax.experimental.pallas import tpu as pltpu


def _build_pe_table(d_model: int, max_seq_length: int,
                    dtype=jnp.float32) -> jnp.ndarray:
    """Sinusoidal positional-encoding table, shape (1, L, D) (PyTorch __init__)."""
    position = jnp.arange(0, max_seq_length, dtype=jnp.float32)[:, None]      # (L, 1)
    div_term = jnp.exp(
        jnp.arange(0, d_model, 2, dtype=jnp.float32) * (-(math.log(10000.0) / d_model))
    )                                                                          # (D/2,)
    ang = position * div_term                                                  # (L, D/2)
    pe = jnp.zeros((max_seq_length, d_model), dtype=jnp.float32)
    pe = pe.at[:, 0::2].set(jnp.sin(ang))
    pe = pe.at[:, 1::2].set(jnp.cos(ang))
    return pe[None, :, :].astype(dtype)                                        # (1, L, D)


def _add_pe_kernel(x_ref, pe_ref, o_ref):
    # x_ref, o_ref: (B, ts, D) tiles; pe_ref: (ts, D) tile (batch squeezed).
    # Cast pe to the compute dtype in-kernel and broadcast over batch.
    o_ref[...] = (x_ref[...] + pe_ref[...].astype(x_ref.dtype)).astype(o_ref.dtype)


# Live double-buffered VMEM budget for the three blocks (x, out, pe) and the
# explicit scoped-VMEM limit handed to Mosaic.  32 MiB is safe on all of
# v5e / v6e (128 MiB physical) and v7x (64 MiB physical).
_VMEM_BUDGET_BYTES = 24 * 1024 * 1024
_VMEM_LIMIT_BYTES = 32 * 1024 * 1024


def _choose_seq_tile(B: int, S: int, D: int,
                     x_itemsize: int, pe_itemsize: int) -> int:
    """Largest sequence tile whose double-buffered blocks fit the VMEM budget.

    Returns the full S when it fits (block == full array dim, always legal),
    otherwise a multiple of 8 so the (8, 128) block constraint holds
    (D = d_model = 512 is a multiple of 128).
    """
    # Bytes per sequence row across the live blocks: x block + out block + pe block.
    row_bytes = 2 * B * D * x_itemsize + D * pe_itemsize
    rows = _VMEM_BUDGET_BYTES // (2 * row_bytes)   # 2x for double buffering
    if rows >= S:
        return S
    rows = max(8, (rows // 8) * 8)
    return min(rows, S)


def positional_encoding_forward(x: jnp.ndarray, pe: jnp.ndarray, *,
                                seq_tile: int | None = None,
                                donate_x: bool = False) -> jnp.ndarray:
    """x: (B, S, D), pe: (1, L, D) with L >= S.  Returns x + pe[:, :S]."""
    B, S, D = x.shape
    assert pe.ndim == 3 and pe.shape[0] == 1 and pe.shape[2] == D and pe.shape[1] >= S
    L = pe.shape[1]

    if seq_tile is None:
        ts = _choose_seq_tile(B, S, D, x.dtype.itemsize, pe.dtype.itemsize)
    else:
        # Round a user-supplied tile to something legal: full S, or a multiple of 8.
        ts = min(int(seq_tile), S)
        if ts < S:
            ts = max(8, (ts // 8) * 8)

    pe_in = pe
    if ts == S and S % 8 != 0 and L != S:
        # A full-S block that is not sublane-aligned is only legal if it also
        # spans pe's full seq dim.  Prefer a multiple-of-8 tile; for tiny S < 8
        # fall back to a (negligible) wrapper slice so block == full pe dim.
        if S >= 8:
            ts = (S // 8) * 8
        else:
            pe_in = pe[:, :S, :]

    num_s_tiles = pl.cdiv(S, ts)

    extra = {}
    if donate_x:
        # Write the result in place over x (no separate HBM output alloc).
        extra["input_output_aliases"] = {0: 0}

    return pl.pallas_call(
        _add_pe_kernel,
        out_shape=jax.ShapeDtypeStruct((B, S, D), x.dtype),
        grid_spec=pltpu.PrefetchScalarGridSpec(
            num_scalar_prefetch=0,
            grid=(num_s_tiles,),
            in_specs=[
                # x: full batch, one sequence tile.
                pl.BlockSpec((B, ts, D), lambda s: (0, s, 0)),
                # pe: same sequence tile, batch dim squeezed; index map keeps
                # reads confined to the first cdiv(S, ts) tiles of the table.
                pl.BlockSpec((None, ts, D), lambda s: (0, s, 0)),
            ],
            out_specs=pl.BlockSpec((B, ts, D), lambda s: (0, s, 0)),
        ),
        compiler_params=pltpu.CompilerParams(
            # Pure elementwise map over the sequence axis -> parallel.
            dimension_semantics=("parallel",),
            vmem_limit_bytes=_VMEM_LIMIT_BYTES,
        ),
        **extra,
    )(x, pe_in)


if __name__ == "__main__":
    # Shapes consistent with the module: d_model=512, max_seq_length=201.
    d_model = 512
    max_seq_length = 201
    batch, seq_len = 2, 8

    pe = _build_pe_table(d_model, max_seq_length)
    key = jax.random.PRNGKey(0)
    x = jax.random.normal(key, (batch, seq_len, d_model), dtype=jnp.float32)

    # 1) Small-sequence forward (single grid step, pe read confined by index map).
    out = jax.block_until_ready(positional_encoding_forward(x, pe))
    ref = x + pe[:, :seq_len, :]
    assert out.shape == (batch, seq_len, d_model)
    assert jnp.allclose(out, ref, atol=1e-6, rtol=1e-6)

    # 2) Full max_seq_length (non-multiple-of-8 S == L, block == full array dim).
    x_full = jax.random.normal(jax.random.PRNGKey(1),
                               (batch, max_seq_length, d_model), dtype=jnp.float32)
    ref_full = x_full + pe[:, :max_seq_length, :]
    out_full = jax.block_until_ready(positional_encoding_forward(x_full, pe))
    assert jnp.allclose(out_full, ref_full, atol=1e-6, rtol=1e-6)

    # 3) Forced sequence tiling (multi-tile grid + ragged edge block).
    out_tiled = jax.block_until_ready(
        positional_encoding_forward(x_full, pe, seq_tile=64))
    assert jnp.allclose(out_tiled, ref_full, atol=1e-6, rtol=1e-6)

    # 4) bf16 path: pe cast to x.dtype inside the kernel -> bf16 add, bf16 store.
    x_bf16 = x.astype(jnp.bfloat16)
    out_bf16 = jax.block_until_ready(positional_encoding_forward(x_bf16, pe))
    ref_bf16 = x_bf16 + pe[:, :seq_len, :].astype(jnp.bfloat16)
    assert out_bf16.dtype == jnp.bfloat16
    assert jnp.allclose(out_bf16.astype(jnp.float32), ref_bf16.astype(jnp.float32),
                        atol=1e-2, rtol=1e-2)

    # 5) S < L with S not a multiple of 8 (sublane-aligned fallback tile).
    x_12 = jax.random.normal(jax.random.PRNGKey(2),
                             (batch, 12, d_model), dtype=jnp.float32)
    out_12 = jax.block_until_ready(positional_encoding_forward(x_12, pe))
    assert jnp.allclose(out_12, x_12 + pe[:, :12, :], atol=1e-6, rtol=1e-6)

    # 6) Tiny S < 8 with S < L (pe-slice fallback so block == full pe dim).
    x_5 = jax.random.normal(jax.random.PRNGKey(3),
                            (batch, 5, d_model), dtype=jnp.float32)
    out_5 = jax.block_until_ready(positional_encoding_forward(x_5, pe))
    assert jnp.allclose(out_5, x_5 + pe[:, :5, :], atol=1e-6, rtol=1e-6)

    print("KERNEL_OK")
</pallas_src>

<mosaic_0001>
module attributes {stable_mosaic.version = 11 : i64} {
  func.func @_add_pe_kernel(%arg0: i32, %arg1: memref<2x8x512xf32, #tpu.memory_space<vmem>>, %arg2: memref<1x8x512xf32, #tpu.memory_space<vmem>>, %arg3: memref<2x8x512xf32, #tpu.memory_space<vmem>>) attributes {dimension_semantics = [#tpu.dimension_semantics<parallel>], iteration_bounds = array<i64: 1>, scalar_prefetch = 0 : i64, scratch_operands = 0 : i64, tpu.core_type = #tpu.core_type<tc>, window_params = [{transform_indices = @transform_0, window_bounds = array<i64: 2, 8, 512>}, {transform_indices = @transform_1, window_bounds = array<i64: 1, 8, 512>}, {transform_indices = @transform_2, window_bounds = array<i64: 2, 8, 512>}]} {
    %c0 = arith.constant 0 : index
    %c0_0 = arith.constant 0 : index
    %c0_1 = arith.constant 0 : index
    %0 = vector.load %arg1[%c0, %c0_0, %c0_1] : memref<2x8x512xf32, #tpu.memory_space<vmem>>, vector<2x8x512xf32>
    %c0_2 = arith.constant 0 : index
    %c0_3 = arith.constant 0 : index
    %c0_4 = arith.constant 0 : index
    %1 = vector.load %arg2[%c0_2, %c0_3, %c0_4] : memref<1x8x512xf32, #tpu.memory_space<vmem>>, vector<1x8x512xf32>
    %2 = vector.shape_cast %1 : vector<1x8x512xf32> to vector<8x512xf32>
    %3 = vector.shape_cast %2 : vector<8x512xf32> to vector<1x8x512xf32>
    %4 = vector.broadcast %3 : vector<1x8x512xf32> to vector<2x8x512xf32>
    %5 = arith.addf %0, %4 : vector<2x8x512xf32>
    %c0_5 = arith.constant 0 : index
    %c0_6 = arith.constant 0 : index
    %c0_7 = arith.constant 0 : index
    %6 = vector.load %arg3[%c0_5, %c0_6, %c0_7] : memref<2x8x512xf32, #tpu.memory_space<vmem>>, vector<2x8x512xf32>
    tpu.vector_store %arg3[%c0_5, %c0_6, %c0_7], %5 {strides = array<i32>} : memref<2x8x512xf32, #tpu.memory_space<vmem>>, vector<2x8x512xf32>,
    return
  }
  func.func @transform_0(%arg0: i32) -> (i32, i32, i32) {
    %c0_i32 = arith.constant 0 : i32
    %c0_i32_0 = arith.constant 0 : i32
    %c0_i32_1 = arith.constant 0 : i32
    return %c0_i32, %arg0, %c0_i32_0 : i32, i32, i32
  }
  func.func @transform_1(%arg0: i32) -> (i32, i32, i32) {
    %c0_i32 = arith.constant 0 : i32
    %c0_i32_0 = arith.constant 0 : i32
    %c0_i32_1 = arith.constant 0 : i32
    return %c0_i32, %arg0, %c0_i32_0 : i32, i32, i32
  }
  func.func @transform_2(%arg0: i32) -> (i32, i32, i32) {
    %c0_i32 = arith.constant 0 : i32
    %c0_i32_0 = arith.constant 0 : i32
    %c0_i32_1 = arith.constant 0 : i32
    return %c0_i32, %arg0, %c0_i32_0 : i32, i32, i32
  }
}

</mosaic_0001>

<llo_original>
// kernel: tpu_custom_call.1
$region0: #{tpu_custom_call.1}
  #allocation0 [shape = 'u32[]', space=smem, size = 0x4, offset = 0x4, fixed_abs, tag = 'smem constant byte address 0x4 - core index']
  #allocation1 [shape = 'u32[144,128]{1,0:T(1,128)}', space=vmem, size = 0x12000, scoped, tag = 'internal scratch']
  %s0 = inlined_call_operand.vmem [shape: f32[2,8,512], index: 0, kind: input, shape index: {}]
  %s1 = inlined_call_operand.vmem [shape: f32[1,201,512], index: 1, kind: input, shape index: {}]
  %s2 = inlined_call_operand.hbm [shape: f32[2,8,512], index: 2, kind: output, shape index: {}]
  %s3 = sld [smem:[#allocation0]]
  $region18: #{tpu_custom_call.1} parent=0
    _
  %s5 = ssub.s32 1, %s3
  %s6 = scalar_select 0, %s5, %s3
  $region1: #{tpu_custom_call.1} parent=0
    #allocation2 [shape = 'u8[32768]{0}', space=vmem, size = 0x8000, scoped, tag = 'output window, operand 0, single buffered']
    #allocation3 [shape = 's32[1]{0}', space=sflag, size = 0x4, scoped, tag = 'scoped memory for tpu_custom_call.1']
    %7 = vsyncpa [#allocation3], 0
    // Predicated region
    $region2: #{tpu_custom_call.1} parent=1 // pred_check
      _
    $region3: #{tpu_custom_call.1} parent=1 // pred_check_branch
      %9 = sbr.rel (0) target = $region5
    $region4: #{tpu_custom_call.1} parent=1 // pred_region
      _
    $region5: #{tpu_custom_call.1} parent=1 // pred_fallthru
      _
    // Predicated region
    $region6: #{tpu_custom_call.1} parent=1 // pred_check
      _
    $region7: #{tpu_custom_call.1} parent=1 // pred_check_branch
      %11 = sbr.rel (0) target = $region9
    $region8: #{tpu_custom_call.1} parent=1 // pred_region
      _
    $region9: #{tpu_custom_call.1} parent=1 // pred_fallthru
      _
    %v12 = vld [vmem:[%s0] sm:$0xff]
    %v13 = vld [vmem:[%s0 + $0x8] sm:$0xff]
    %v14 = vld [vmem:[%s0 + $0x10] sm:$0xff]
    %v15 = vld [vmem:[%s0 + $0x18] sm:$0xff]
    %v16 = vld [vmem:[%s0 + $0x20] sm:$0xff]
    %v17 = vld [vmem:[%s0 + $0x28] sm:$0xff]
    %v18 = vld [vmem:[%s0 + $0x30] sm:$0xff]
    %v19 = vld [vmem:[%s0 + $0x38] sm:$0xff]
    %v20 = vld [vmem:[%s1] sm:$0xff]
    %v21 = vld [vmem:[%s1 + $0x8] sm:$0xff]
    %v22 = vld [vmem:[%s1 + $0x10] sm:$0xff]
    %v23 = vld [vmem:[%s1 + $0x18] sm:$0xff]
    %v24 = vadd.f32 %v12, %v20
    %v25 = vadd.f32 %v13, %v21
    %v26 = vadd.f32 %v14, %v22
    %v27 = vadd.f32 %v15, %v23
    %v28 = vadd.f32 %v16, %v20
    %v29 = vadd.f32 %v17, %v21
    %v30 = vadd.f32 %v18, %v22
    %v31 = vadd.f32 %v19, %v23
    %32 = vst [vmem:[#allocation2] sm:$0xff] %v24
    %33 = vst [vmem:[#allocation2 + $0x8] sm:$0xff] %v25
    %34 = vst [vmem:[#allocation2 + $0x10] sm:$0xff] %v26
    %35 = vst [vmem:[#allocation2 + $0x18] sm:$0xff] %v27
    %36 = vst [vmem:[#allocation2 + $0x20] sm:$0xff] %v28
    %37 = vst [vmem:[#allocation2 + $0x28] sm:$0xff] %v29
    %38 = vst [vmem:[#allocation2 + $0x30] sm:$0xff] %v30
    %39 = vst [vmem:[#allocation2 + $0x38] sm:$0xff] %v31
    // Predicated region
    $region10: #{tpu_custom_call.1} parent=1 // pred_check
      _
    $region11: #{tpu_custom_call.1} parent=1 // pred_check_branch
      %41 = sbr.rel (0) target = $region13
    $region12: #{tpu_custom_call.1} parent=1 // pred_region
      %s43 = ssub.s32 1024, 1024
      %44 = vsyncadd [#allocation3], %s43
      %s45 = sshll.u32 [#allocation2], 4
      %s46 = int_to_ptr.vmem [resolvable:$true] %s45
      %51 = dma.vmem_to_hbm [thread:$0]  %s46, 1024, %s2, [#allocation3], 512, 512, 32
    $region13: #{tpu_custom_call.1} parent=1 // pred_fallthru
      _
    // Predicated region
    $region14: #{tpu_custom_call.1} parent=1 // pred_check
      _
    $region15: #{tpu_custom_call.1} parent=1 // pred_check_branch
      %53 = sbr.rel (0) target = $region17
    $region16: #{tpu_custom_call.1} parent=1 // pred_region
      %54 = dma.done [#allocation3], 1024
    $region17: #{tpu_custom_call.1} parent=1 // pred_fallthru
      _
    %55 = vsyncpa [#allocation3], 1

</llo_original>
